<compile_context>
chip_gen: v6e
topology: v6e:2x2x1
jax: 0.10.0
libtpu: 0.0.40
codegen_flags: <defaults>
</compile_context>

<pallas_src>
import jax
import jax.numpy as jnp
from jax.experimental import pallas as pl
from jax.experimental.pallas import tpu as pltpu

_MiB = 1024 * 1024


def _round_up(x: int, m: int) -> int:
    return ((x + m - 1) // m) * m


# --------------------------------------------------------------------------- #
# Kernel body (one batch tile)
# --------------------------------------------------------------------------- #
def _neg_sampling_loss_kernel(anchor_ref, positive_ref, negative_ref, out_ref):
    """Writes the per-row loss for one batch tile, shape (tile_b, 1), f32."""
    a = anchor_ref[...].astype(jnp.float32)                              # (tb, D)
    p = positive_ref[...].astype(jnp.float32)                            # (tb, D)

    # Positive Euclidean distance.
    dp = a - p
    pos_d = jnp.sqrt(jnp.sum(dp * dp, axis=-1, keepdims=True))           # (tb, 1)

    # Negative Euclidean distances: single fused diff-square-sum pass on the
    # VPU over the streamed tile (exact, no MXU, no cancellation, no extra f32
    # copy of the negative tile).  Hidden under the negative-tile DMA.
    dn = a[:, None, :] - negative_ref[...].astype(jnp.float32)           # (tb, N, D)
    neg_d = jnp.sqrt(jnp.sum(dn * dn, axis=-1))                          # (tb, N)

    # cross_entropy(-dist, target=0) = pos_d + logsumexp(-[pos_d | neg_d]).
    # Fused LSE: no concatenation to lane width 1+N.
    lp = -pos_d                                                          # (tb, 1)
    ln = -neg_d                                                          # (tb, N)
    m = jnp.maximum(lp, jnp.max(ln, axis=-1, keepdims=True))             # (tb, 1)
    se = jnp.exp(lp - m) + jnp.sum(jnp.exp(ln - m), axis=-1, keepdims=True)
    lse = m + jnp.log(se)                                                # (tb, 1)

    out_ref[...] = (pos_d + lse).astype(out_ref.dtype)


# --------------------------------------------------------------------------- #
# Sizing helpers
# --------------------------------------------------------------------------- #
def _device_profile():
    """Per-generation VMEM budget / scoped limit / minimum grid steps."""
    vmem_cap = None
    try:
        info = pltpu.get_tpu_info()
        vmem_cap = getattr(info, "vmem_capacity_bytes", None)
    except Exception:
        vmem_cap = None
    kind = ""
    try:
        kind = jax.devices()[0].device_kind.lower()
    except Exception:
        kind = ""

    big_vmem = False
    if vmem_cap is not None and vmem_cap >= 100 * _MiB:
        big_vmem = True
    elif any(tag in kind for tag in ("v5", "v6", "trillium")):
        big_vmem = True

    if big_vmem:
        # v5e / v6e: 128 MiB physical VMEM, one TensorCore per chip.
        return {"budget": 56 * _MiB, "vmem_limit": 96 * _MiB, "min_grid_steps": 1}
    # v7x / unknown: 64 MiB per TC, two TCs -> smaller tiles, >=2 grid steps
    # so dimension_semantics=("parallel",) shards across both cores.
    return {"budget": 24 * _MiB, "vmem_limit": 32 * _MiB, "min_grid_steps": 2}


def _pick_tile_b(batch: int, num_neg: int, dim: int,
                 neg_itemsize: int, anc_itemsize: int,
                 budget_bytes: int, min_grid_steps: int,
                 max_tile_b: int = 512) -> int:
    """Largest batch tile whose double-buffered, layout-padded working set fits
    the VMEM budget (and that leaves >= min_grid_steps grid steps)."""
    d_pad = _round_up(dim, 128)                          # lane padding
    sub_neg = max(8, 32 // max(neg_itemsize, 1))         # sublane pack (f32:8, bf16:16, i8:32)
    n_pad_in = _round_up(num_neg, sub_neg)               # streamed negative tile layout
    n_pad_f32 = _round_up(num_neg, 8)                    # f32 temporaries layout

    per_row = (2 * n_pad_in * d_pad * neg_itemsize       # double-buffered negative tile
               + 2 * 2 * d_pad * anc_itemsize            # double-buffered anchor + positive
               + 3 * n_pad_f32 * d_pad * 4               # in-kernel f32 (N,D) temporaries
               + 8 * _round_up(num_neg, 128) * 4         # (tb, N) f32 temporaries
               + 8 * 128 * 4)                            # (tb, 1) column stats
    per_row = max(per_row, 1)

    tile_b = (budget_bytes // per_row) // 8 * 8
    tile_b = max(tile_b, 8)
    tile_b = min(tile_b, max_tile_b)
    if min_grid_steps > 1 and batch > 8:
        tile_b = min(tile_b, _round_up(pl.cdiv(batch, min_grid_steps), 8))
    if tile_b >= batch:
        return int(batch)                                # single full tile, no OOB rows
    return int(tile_b)


# --------------------------------------------------------------------------- #
# Public wrapper
# --------------------------------------------------------------------------- #
def negative_sampling_loss(anchor: jax.Array,
                           positive: jax.Array,
                           negative: jax.Array,
                           reduction: str = "mean",
                           max_tile_b: int | None = None) -> jax.Array:
    """anchor (B, D), positive (B, D), negative (B, N, D) -> scalar f32 loss.
    Inputs are streamed in their native dtype (math in f32 inside the kernel)."""
    B, D = anchor.shape
    Bn, N, Dn = negative.shape
    assert Bn == B and Dn == D and positive.shape == (B, D)

    prof = _device_profile()
    tile_b = _pick_tile_b(
        B, N, D,
        neg_itemsize=jnp.dtype(negative.dtype).itemsize,
        anc_itemsize=jnp.dtype(anchor.dtype).itemsize,
        budget_bytes=prof["budget"],
        min_grid_steps=prof["min_grid_steps"],
        max_tile_b=512 if max_tile_b is None else int(max_tile_b))

    # No jnp.pad of the full (B, N, D) tensor: partial last block reads OOB
    # garbage rows which are sliced away below (never reduced in-kernel).
    grid_n = pl.cdiv(B, tile_b)
    out_rows = grid_n * tile_b

    cost = pl.CostEstimate(
        flops=int(3 * B * N * D + 6 * B * D + 10 * B * N),
        transcendentals=int(B * (2 * N + 5)),
        bytes_accessed=int(anchor.nbytes + positive.nbytes + negative.nbytes
                           + out_rows * 4),
    )

    per_row = pl.pallas_call(
        _neg_sampling_loss_kernel,
        out_shape=jax.ShapeDtypeStruct((out_rows, 1), jnp.float32),
        grid=(grid_n,),
        in_specs=[
            pl.BlockSpec((tile_b, D), lambda i: (i, 0)),
            pl.BlockSpec((tile_b, D), lambda i: (i, 0)),
            pl.BlockSpec((tile_b, N, D), lambda i: (i, 0, 0)),
        ],
        out_specs=pl.BlockSpec((tile_b, 1), lambda i: (i, 0)),
        compiler_params=pltpu.CompilerParams(
            dimension_semantics=("parallel",),
            vmem_limit_bytes=int(prof["vmem_limit"]),
        ),
        cost_estimate=cost,
    )(anchor, positive, negative)

    per_row = per_row[:B, 0]          # drop partial-block garbage rows
    if reduction == "mean":
        return jnp.sum(per_row) / B   # divide by the TRUE batch size
    if reduction == "sum":
        return jnp.sum(per_row)
    return per_row                    # reduction == 'none'


# --------------------------------------------------------------------------- #
# Pure-JAX reference (mirrors the PyTorch forward, Euclidean distance)
# --------------------------------------------------------------------------- #
def _reference_loss(anchor, positive, negative):
    a = anchor.astype(jnp.float32)
    p = positive.astype(jnp.float32)
    n = negative.astype(jnp.float32)
    pos_d = jnp.linalg.norm(a - p, axis=-1)                       # (B,)
    neg_d = jnp.linalg.norm(a[:, None, :] - n, axis=-1)           # (B, N)
    dist = jnp.concatenate([pos_d[:, None], neg_d], axis=-1)      # (B, 1+N)
    logp = jax.nn.log_softmax(-dist, axis=-1)
    return jnp.mean(-logp[:, 0])


if __name__ == "__main__":
    key = jax.random.PRNGKey(0)
    cases = [
        # (B, N, D, dtype, max_tile_b)
        (12, 8, 32, jnp.float32, None),    # ragged batch
        (16, 5, 128, jnp.float32, None),   # lane-dense embedding dim
        (150, 6, 64, jnp.float32, 64),     # multi-step grid + partial last block
        (10, 7, 48, jnp.bfloat16, None),   # native-dtype (bf16) streaming
    ]
    for B, N, D, dtype, mtb in cases:
        key, k_a, k_p, k_n = jax.random.split(key, 4)
        anchor = jax.random.normal(k_a, (B, D), dtype=jnp.float32).astype(dtype)
        positive = jax.random.normal(k_p, (B, D), dtype=jnp.float32).astype(dtype)
        negative = jax.random.normal(k_n, (B, N, D), dtype=jnp.float32).astype(dtype)

        loss = jax.block_until_ready(
            negative_sampling_loss(anchor, positive, negative, max_tile_b=mtb))
        ref = _reference_loss(anchor, positive, negative)
        assert jnp.isfinite(loss), (B, N, D, str(dtype), loss)
        assert jnp.allclose(loss, ref, rtol=2e-3, atol=2e-3), (B, N, D, str(dtype), loss, ref)

    print("KERNEL_OK")
</pallas_src>

<mosaic_0001>
module attributes {stable_mosaic.version = 11 : i64} {
  func.func @_neg_sampling_loss_kernel(%arg0: i32, %arg1: memref<8x32xf32, #tpu.memory_space<vmem>>, %arg2: memref<8x32xf32, #tpu.memory_space<vmem>>, %arg3: memref<8x8x32xf32, #tpu.memory_space<vmem>>, %arg4: memref<8x1xf32, #tpu.memory_space<vmem>>) attributes {dimension_semantics = [#tpu.dimension_semantics<parallel>], iteration_bounds = array<i64: 2>, scalar_prefetch = 0 : i64, scratch_operands = 0 : i64, tpu.core_type = #tpu.core_type<tc>, window_params = [{transform_indices = @transform_0, window_bounds = array<i64: 8, 32>}, {transform_indices = @transform_1, window_bounds = array<i64: 8, 32>}, {transform_indices = @transform_2, window_bounds = array<i64: 8, 8, 32>}, {transform_indices = @transform_3, window_bounds = array<i64: 8, 1>}]} {
    %c0 = arith.constant 0 : index
    %c0_0 = arith.constant 0 : index
    %0 = vector.load %arg1[%c0, %c0_0] : memref<8x32xf32, #tpu.memory_space<vmem>>, vector<8x32xf32>
    %c0_1 = arith.constant 0 : index
    %c0_2 = arith.constant 0 : index
    %1 = vector.load %arg2[%c0_1, %c0_2] : memref<8x32xf32, #tpu.memory_space<vmem>>, vector<8x32xf32>
    %2 = arith.subf %0, %1 : vector<8x32xf32>
    %3 = arith.mulf %2, %2 : vector<8x32xf32>
    %cst = arith.constant dense<0.000000e+00> : vector<8xf32>
    %4 = vector.multi_reduction <add>, %3, %cst [1] : vector<8x32xf32> to vector<8xf32>
    %5 = vector.shape_cast %4 : vector<8xf32> to vector<8x1xf32>
    %6 = math.sqrt %5 : vector<8x1xf32>
    %7 = vector.shape_cast %0 : vector<8x32xf32> to vector<8x1x32xf32>
    %c0_3 = arith.constant 0 : index
    %c0_4 = arith.constant 0 : index
    %c0_5 = arith.constant 0 : index
    %8 = vector.load %arg3[%c0_3, %c0_4, %c0_5] : memref<8x8x32xf32, #tpu.memory_space<vmem>>, vector<8x8x32xf32>
    %9 = vector.broadcast %7 : vector<8x1x32xf32> to vector<8x8x32xf32>
    %10 = arith.subf %9, %8 : vector<8x8x32xf32>
    %11 = arith.mulf %10, %10 : vector<8x8x32xf32>
    %cst_6 = arith.constant dense<0.000000e+00> : vector<8x8xf32>
    %12 = vector.multi_reduction <add>, %11, %cst_6 [2] : vector<8x8x32xf32> to vector<8x8xf32>
    %13 = math.sqrt %12 : vector<8x8xf32>
    %cst_7 = arith.constant 0.000000e+00 : f32
    %14 = vector.broadcast %cst_7 : f32 to vector<8x1xf32>
    %15 = arith.subf %14, %6 : vector<8x1xf32>
    %cst_8 = arith.constant 0.000000e+00 : f32
    %16 = vector.broadcast %cst_8 : f32 to vector<8x8xf32>
    %17 = arith.subf %16, %13 : vector<8x8xf32>
    %cst_9 = arith.constant dense<0xFF800000> : vector<8xf32>
    %18 = vector.multi_reduction <maximumf>, %17, %cst_9 [1] : vector<8x8xf32> to vector<8xf32>
    %19 = vector.shape_cast %18 : vector<8xf32> to vector<8x1xf32>
    %20 = arith.maximumf %15, %19 : vector<8x1xf32>
    %21 = arith.subf %15, %20 : vector<8x1xf32>
    %22 = math.exp %21 : vector<8x1xf32>
    %23 = vector.broadcast %20 : vector<8x1xf32> to vector<8x8xf32>
    %24 = arith.subf %17, %23 : vector<8x8xf32>
    %25 = math.exp %24 : vector<8x8xf32>
    %cst_10 = arith.constant dense<0.000000e+00> : vector<8xf32>
    %26 = vector.multi_reduction <add>, %25, %cst_10 [1] : vector<8x8xf32> to vector<8xf32>
    %27 = vector.shape_cast %26 : vector<8xf32> to vector<8x1xf32>
    %28 = arith.addf %22, %27 : vector<8x1xf32>
    %29 = math.log %28 : vector<8x1xf32>
    %30 = arith.addf %20, %29 : vector<8x1xf32>
    %31 = arith.addf %6, %30 : vector<8x1xf32>
    %c0_11 = arith.constant 0 : index
    %c0_12 = arith.constant 0 : index
    %32 = vector.load %arg4[%c0_11, %c0_12] : memref<8x1xf32, #tpu.memory_space<vmem>>, vector<8x1xf32>
    tpu.vector_store %arg4[%c0_11, %c0_12], %31 {strides = array<i32>} : memref<8x1xf32, #tpu.memory_space<vmem>>, vector<8x1xf32>,
    return
  }
  func.func @transform_0(%arg0: i32) -> (i32, i32) {
    %c0_i32 = arith.constant 0 : i32
    %c0_i32_0 = arith.constant 0 : i32
    return %arg0, %c0_i32 : i32, i32
  }
  func.func @transform_1(%arg0: i32) -> (i32, i32) {
    %c0_i32 = arith.constant 0 : i32
    %c0_i32_0 = arith.constant 0 : i32
    return %arg0, %c0_i32 : i32, i32
  }
  func.func @transform_2(%arg0: i32) -> (i32, i32, i32) {
    %c0_i32 = arith.constant 0 : i32
    %c0_i32_0 = arith.constant 0 : i32
    %c0_i32_1 = arith.constant 0 : i32
    return %arg0, %c0_i32, %c0_i32_0 : i32, i32, i32
  }
  func.func @transform_3(%arg0: i32) -> (i32, i32) {
    %c0_i32 = arith.constant 0 : i32
    %c0_i32_0 = arith.constant 0 : i32
    return %arg0, %c0_i32 : i32, i32
  }
}

</mosaic_0001>

<llo_original>
// kernel: tpu_custom_call.1
$region0: #{tpu_custom_call.1}
  #allocation0 [shape = 'u32[]', space=smem, size = 0x4, offset = 0x4, fixed_abs, tag = 'smem constant byte address 0x4 - core index']
  #allocation1 [shape = 'u32[144,128]{1,0:T(1,128)}', space=vmem, size = 0x12000, scoped, tag = 'internal scratch']
  %s0 = inlined_call_operand.hbm [shape: f32[12,32], index: 0, kind: input, shape index: {}]
  %s1 = inlined_call_operand.hbm [shape: f32[12,32], index: 1, kind: input, shape index: {}]
  %s2 = inlined_call_operand.hbm [shape: f32[12,8,32], index: 2, kind: input, shape index: {}]
  %s3 = inlined_call_operand.vmem [shape: f32[16,1], index: 3, kind: output, shape index: {}]
  %s4 = sld [smem:[#allocation0]]
  $region57: #{tpu_custom_call.1} parent=0
    _
  %s6 = ssub.s32 1, %s4
  %s7 = scalar_select 0, %s6, %s4
  $region1: #{tpu_custom_call.1} parent=0
    #allocation2 [shape = 'u8[8192]{0}', space=vmem, size = 0x2000, scoped, tag = 'input window, operand 0']
    #allocation3 [shape = 's32[2]{0}', space=sflag, size = 0x8, scoped, tag = 'scoped memory for tpu_custom_call.1']
    #allocation4 [shape = 'u8[8192]{0}', space=vmem, size = 0x2000, scoped, tag = 'input window, operand 1']
    #allocation5 [shape = 's32[2]{0}', space=sflag, size = 0x8, scoped, tag = 'scoped memory for tpu_custom_call.1']
    #allocation6 [shape = 'u8[65536]{0}', space=vmem, size = 0x10000, scoped, tag = 'input window, operand 2']
    %8 = vsyncpa [#allocation3], 0
    %s9 = scalar_lea.sflag [#allocation3], 1
    %10 = vsyncpa %s9, 0
    %11 = vsyncpa [#allocation5], 0
    %s12 = scalar_lea.sflag [#allocation5], 1
    %13 = vsyncpa %s12, 0
    loop: start=0, step=1, limit=4
    $region2: #{tpu_custom_call.1} parent=1 // loop_pre_header
      _
    $region3: #{tpu_custom_call.1} parent=1 // loop_header
      %s15 = sphi 0, %s19
      %p16 = scmp.ge.s32.totalorder %s15, 4
      %s25 = sphi 0, %s27
      %s28 = sphi 0, %s25
      %s29 = sphi 0, %s28
      %s45 = sphi 0, %s29
      %s51 = sphi 0, %s53
      %s54 = sphi 0, %s51
      %s55 = sphi 0, %s54
      %s71 = sphi 0, %s55
      %s77 = sphi 0, %s79
      %s80 = sphi 0, %s77
      %s81 = sphi 0, %s80
      %s97 = sphi 0, %s81
      %s103 = sphi 0, %s105
      %s106 = sphi 0, %s103
      %s107 = sphi 0, %s106
      %s123 = sphi 0, %s107
    $region4: #{tpu_custom_call.1} parent=1 // loop_header_branch
      %18 = sbr.rel (%p16) target = $region8
    $region5: #{tpu_custom_call.1} parent=1 // loop_body
      %s20 = ssub.s32 %s15, 1
      %s21 = ssub.s32 %s15, 2
      %s22 = sadd.s32 %s15, 1
      %s23 = ssub.s32 %s15, %s22
      %p24 = scmp.eq.s32.totalorder %s23, 0
      %s26 = sadd.s32 %s25, 1
      %s27 = scalar_select %p24, %s25, %s26
      %p30 = pneg %p24
      %p31 = scmp.eq.s32.totalorder %s15, 1
      %p32 = por %p30, %p31
      %p33 = scmp.ne.s32.totalorder %s25, %s28
      %p34 = scmp.eq.s32.totalorder %s15, 0
      %p35 = por %p33, %p34
      %p36 = scmp.ne.s32.totalorder %s25, %s28
      %p37 = scmp.eq.s32.totalorder %s20, 1
      %p38 = por %p36, %p37
      %p39 = scmp.ne.s32.totalorder %s28, %s29
      %p40 = scmp.eq.s32.totalorder %s20, 0
      %p41 = por %p39, %p40
      %p42 = scmp.ne.s32.totalorder %s28, %s29
      %p43 = scmp.eq.s32.totalorder %s21, 1
      %p44 = por %p42, %p43
      %p46 = scmp.ne.s32.totalorder %s29, %s45
      %p47 = scmp.eq.s32.totalorder %s21, 0
      %p48 = por %p46, %p47
      %s49 = ssub.s32 %s15, %s22
      %p50 = scmp.eq.s32.totalorder %s49, 0
      %s52 = sadd.s32 %s51, 1
      %s53 = scalar_select %p50, %s51, %s52
      %p56 = pneg %p50
      %p57 = scmp.eq.s32.totalorder %s15, 1
      %p58 = por %p56, %p57
      %p59 = scmp.ne.s32.totalorder %s51, %s54
      %p60 = scmp.eq.s32.totalorder %s15, 0
      %p61 = por %p59, %p60
      %p62 = scmp.ne.s32.totalorder %s51, %s54
      %p63 = scmp.eq.s32.totalorder %s20, 1
      %p64 = por %p62, %p63
      %p65 = scmp.ne.s32.totalorder %s54, %s55
      %p66 = scmp.eq.s32.totalorder %s20, 0
      %p67 = por %p65, %p66
      %p68 = scmp.ne.s32.totalorder %s54, %s55
      %p69 = scmp.eq.s32.totalorder %s21, 1
      %p70 = por %p68, %p69
      %p72 = scmp.ne.s32.totalorder %s55, %s71
      %p73 = scmp.eq.s32.totalorder %s21, 0
      %p74 = por %p72, %p73
      %s75 = ssub.s32 %s15, %s22
      %p76 = scmp.eq.s32.totalorder %s75, 0
      %s78 = sadd.s32 %s77, 1
      %s79 = scalar_select %p76, %s77, %s78
      %p82 = pneg %p76
      %p83 = scmp.eq.s32.totalorder %s15, 1
      %p84 = por %p82, %p83
      %p85 = scmp.ne.s32.totalorder %s77, %s80
      %p86 = scmp.eq.s32.totalorder %s15, 0
      %p87 = por %p85, %p86
      %p88 = scmp.ne.s32.totalorder %s77, %s80
      %p89 = scmp.eq.s32.totalorder %s20, 1
      %p90 = por %p88, %p89
      %p91 = scmp.ne.s32.totalorder %s80, %s81
      %p92 = scmp.eq.s32.totalorder %s20, 0
      %p93 = por %p91, %p92
      %p94 = scmp.ne.s32.totalorder %s80, %s81
      %p95 = scmp.eq.s32.totalorder %s21, 1
      %p96 = por %p94, %p95
      %p98 = scmp.ne.s32.totalorder %s81, %s97
      %p99 = scmp.eq.s32.totalorder %s21, 0
      %p100 = por %p98, %p99
      %s101 = ssub.s32 %s15, %s22
      %p102 = scmp.eq.s32.totalorder %s101, 0
      %s104 = sadd.s32 %s103, 1
      %s105 = scalar_select %p102, %s103, %s104
      %p108 = pneg %p102
      %p109 = scmp.eq.s32.totalorder %s15, 1
      %p110 = por %p108, %p109
      %p111 = scmp.ne.s32.totalorder %s103, %s106
      %p112 = scmp.eq.s32.totalorder %s15, 0
      %p113 = por %p111, %p112
      %p114 = scmp.ne.s32.totalorder %s103, %s106
      %p115 = scmp.eq.s32.totalorder %s20, 1
      %p116 = por %p114, %p115
      %p117 = scmp.ne.s32.totalorder %s106, %s107
      %p118 = scmp.eq.s32.totalorder %s20, 0
      %p119 = por %p117, %p118
      %p120 = scmp.ne.s32.totalorder %s106, %s107
      %p121 = scmp.eq.s32.totalorder %s21, 1
      %p122 = por %p120, %p121
      %p124 = scmp.ne.s32.totalorder %s107, %s123
      %p125 = scmp.eq.s32.totalorder %s21, 0
      %p126 = por %p124, %p125
      %p127 = scmp.le.s32.totalorder 1, %s15
      %p128 = scmp.lt.s32.totalorder %s15, 3
      %p129 = pnand %p127, %p128
      %p130 = pneg %p129
      // Predicated region
      $region9: #{tpu_custom_call.1} parent=5 // pred_check
        _
      $region10: #{tpu_custom_call.1} parent=5 // pred_check_branch
        %132 = sbr.rel (%p129) target = $region12
      $region11: #{tpu_custom_call.1} parent=5 // pred_region
        %s133 = ssub.s32 %s15, 1
      $region12: #{tpu_custom_call.1} parent=5 // pred_fallthru
        _
      %p134 = scmp.lt.s32.totalorder %s15, 2
      // Predicated region
      $region13: #{tpu_custom_call.1} parent=5 // pred_check
        %p135 = pneg %p134
      $region14: #{tpu_custom_call.1} parent=5 // pred_check_branch
        %137 = sbr.rel (%p135) target = $region16
      $region15: #{tpu_custom_call.1} parent=5 // pred_region
        // Predicated region
        $region17: #{tpu_custom_call.1} parent=15 // pred_check
          %p138 = pneg %p35
        $region18: #{tpu_custom_call.1} parent=15 // pred_check_branch
          %140 = sbr.rel (%p138) target = $region20
        $region19: #{tpu_custom_call.1} parent=15 // pred_region
          %s141 = sand.u32 %s25, 1
          %s142 = scalar_lea.sflag [#allocation3], %s141
          %s143 = sand.u32 %s25, 1
          %s144 = smul.addr %s143, 8
          %s145 = scalar_lea.vmem [#allocation2], %s144
          %s147 = ssub.s32 128, 128
          %148 = vsyncadd %s142, %s147
          %s149 = smul.addr %s15, 128
          %s150 = scalar_lea.hbm %s0, %s149
          %s152 = sshll.u32 %s145, 4
          %s153 = int_to_ptr.vmem [resolvable:$true] %s152
          %155 = dma.hbm_to_vmem [thread:$0]  %s150, 128, %s153, %s142
        $region20: #{tpu_custom_call.1} parent=15 // pred_fallthru
          _
        // Predicated region
        $region21: #{tpu_custom_call.1} parent=15 // pred_check
          %p156 = pneg %p61
        $region22: #{tpu_custom_call.1} parent=15 // pred_check_branch
          %158 = sbr.rel (%p156) target = $region24
        $region23: #{tpu_custom_call.1} parent=15 // pred_region
          %s159 = sand.u32 %s15, 1
          %s160 = scalar_lea.sflag [#allocation5], %s159
          %s161 = sand.u32 %s51, 1
          %s162 = smul.addr %s161, 8
          %s163 = scalar_lea.vmem [#allocation4], %s162
          %s165 = ssub.s32 128, 128
          %166 = vsyncadd %s160, %s165
          %s167 = smul.addr %s15, 128
          %s168 = scalar_lea.hbm %s1, %s167
          %s170 = sshll.u32 %s163, 4
          %s171 = int_to_ptr.vmem [resolvable:$true] %s170
          %173 = dma.hbm_to_vmem [thread:$0]  %s168, 128, %s171, %s160
        $region24: #{tpu_custom_call.1} parent=15 // pred_fallthru
          _
        // Predicated region
        $region25: #{tpu_custom_call.1} parent=15 // pred_check
          %p174 = pneg %p87
        $region26: #{tpu_custom_call.1} parent=15 // pred_check_branch
          %176 = sbr.rel (%p174) target = $region28
        $region27: #{tpu_custom_call.1} parent=15 // pred_region
          %s177 = sand.u32 %s15, 1
          %s178 = scalar_lea.sflag [#allocation5], %s177
          %s179 = sand.u32 %s77, 1
          %s180 = smul.addr %s179, 64
          %s181 = scalar_lea.vmem [#allocation6], %s180
          %s182 = smul.u32 8, %s15
          %s183 = ssub.s32 12, %s182
          %p184 = scmp.lt.s32.totalorder %s183, 8
          %s185 = scalar_select %p184, %s183, 8
          %s186 = smul.u32 128, %s185
          %s188 = ssub.s32 1024, %s186
          %189 = vsyncadd %s178, %s188
          %p190 = scmp.ne.s32.totalorder 0, %s186
          %s191 = smul.addr %s182, 128
          %s192 = scalar_lea.hbm %s2, %s191
          %s193 = smul.u32 8, %s185
          %s194 = sshll.u32 %s181, 4
          %s195 = int_to_ptr.vmem [resolvable:$true] %s194
          %s196 = sshll.u32 %s193, 4
          %200 = dma.hbm_to_vmem [thread:$0]  (%p190), %s192, %s196, %s195, %s178, 128, 128, 8
        $region28: #{tpu_custom_call.1} parent=15 // pred_fallthru
          _
      $region16: #{tpu_custom_call.1} parent=5 // pred_fallthru
        _
      %p201 = scmp.le.s32.totalorder 1, %s15
      %p202 = scmp.lt.s32.totalorder %s15, 3
      %p203 = pnand %p201, %p202
      %p204 = pneg %p203
      // Predicated region
      $region29: #{tpu_custom_call.1} parent=5 // pred_check
        _
      $region30: #{tpu_custom_call.1} parent=5 // pred_check_branch
        %206 = sbr.rel (%p203) target = $region32
      $region31: #{tpu_custom_call.1} parent=5 // pred_region
        %s207 = ssub.s32 %s15, 1
        %s208 = sand.u32 %s28, 1
        %s209 = scalar_lea.sflag [#allocation3], %s208
        %s210 = sand.u32 %s28, 1
        %s211 = smul.addr %s210, 8
        %s212 = scalar_lea.vmem [#allocation2], %s211
        // Predicated region
        $region33: #{tpu_custom_call.1} parent=31 // pred_check
          %p213 = pneg %p41
        $region34: #{tpu_custom_call.1} parent=31 // pred_check_branch
          %215 = sbr.rel (%p213) target = $region36
        $region35: #{tpu_custom_call.1} parent=31 // pred_region
          %216 = dma.done %s209, 128
        $region36: #{tpu_custom_call.1} parent=31 // pred_fallthru
          _
        %s217 = sand.u32 %s20, 1
        %s218 = scalar_lea.sflag [#allocation5], %s217
        %s219 = sand.u32 %s54, 1
        %s220 = smul.addr %s219, 8
        %s221 = scalar_lea.vmem [#allocation4], %s220
        // Predicated region
        $region37: #{tpu_custom_call.1} parent=31 // pred_check
          %p222 = pneg %p67
        $region38: #{tpu_custom_call.1} parent=31 // pred_check_branch
          %224 = sbr.rel (%p222) target = $region40
        $region39: #{tpu_custom_call.1} parent=31 // pred_region
          %225 = dma.done %s218, 128
        $region40: #{tpu_custom_call.1} parent=31 // pred_fallthru
          _
        %s226 = sand.u32 %s20, 1
        %s227 = scalar_lea.sflag [#allocation5], %s226
        %s228 = sand.u32 %s80, 1
        %s229 = smul.addr %s228, 64
        %s230 = scalar_lea.vmem [#allocation6], %s229
        // Predicated region
        $region41: #{tpu_custom_call.1} parent=31 // pred_check
          %p231 = pneg %p93
        $region42: #{tpu_custom_call.1} parent=31 // pred_check_branch
          %233 = sbr.rel (%p231) target = $region44
        $region43: #{tpu_custom_call.1} parent=31 // pred_region
          %234 = dma.done %s227, 1024
        $region44: #{tpu_custom_call.1} parent=31 // pred_fallthru
          _
        %s235 = sand.u32 %s28, 1
        %s236 = scalar_lea.sflag [#allocation3], %s235
        %s237 = sand.u32 %s28, 1
        %s238 = smul.addr %s237, 8
        %s239 = scalar_lea.vmem [#allocation2], %s238
        %p240 = pneg %p41
        %p241 = pneg %p38
        %s242 = sand.u32 %s20, 1
        %s243 = scalar_lea.sflag [#allocation5], %s242
        %s244 = sand.u32 %s54, 1
        %s245 = smul.addr %s244, 8
        %s246 = scalar_lea.vmem [#allocation4], %s245
        %p247 = pneg %p67
        %p248 = pneg %p64
        %s249 = sand.u32 %s20, 1
        %s250 = scalar_lea.sflag [#allocation5], %s249
        %s251 = sand.u32 %s80, 1
        %s252 = smul.addr %s251, 64
        %s253 = scalar_lea.vmem [#allocation6], %s252
        %p254 = pneg %p93
        %p255 = pneg %p90
        %p256 = pneg %p119
        %p257 = pneg %p116
        %p258 = scmp.lt.s32.totalorder %s20, 1
        %s259 = scalar_select %p258, %s20, 1
        %s260 = smul.addr %s259, 8
        %s261 = scalar_lea.vmem %s3, %s260
        %s262 = smul.u32 8, %s20
        %s263 = ssub.s32 12, %s262
        %p264 = scmp.lt.s32.totalorder %s263, 8
        %s265 = scalar_select %p264, %s263, 8
        %s266 = smul.u32 128, %s265
        %p267 = scmp.lt.s32.totalorder %s20, 1
        %s268 = scalar_select %p267, %s20, 1
        %s269 = smul.addr %s268, 8
        %s270 = scalar_lea.vmem %s3, %s269
        %v271 = vld [vmem:[%s212] sm:$0xff]
        %v272 = vld [vmem:[%s221] sm:$0xff]
        %v273 = vsub.f32 %v271, %v272
        %v274 = vmul.f32 %v273, %v273
        %vm275 = vcmask 261120
        %v276 = vsel %vm275, %v274, 0.0
        %277 = vadd.xlane.f32.xlu0 %v276
        %v278 = vpop.xlane.xlu0 %277
        %v279 = vrsqrt.pop %v278
        %v280 = vmul.f32 %v278, %v279
        %vm281 = vcmp.eq.f32.partialorder %v278, inf
        %v282 = vsel %vm281, %v278, %v280
        %vm283 = vcmp.eq.f32.partialorder %v278, 0.0
        %v284 = vand.u32 %v278, 2147483648
        %v285 = vsel %vm283, %v284, %v282
        %v287 = vcombine.high %v271, %v271
        %v289 = vunpack.c.l.s4 1966171168
        %v290 = vunpack.c.0.s8 %v289
        %v291 = vlaneseq
        %v292 = vshrl.u32 %v291, 7
        %v293 = vsub.s32 %v290, %v292
        %v294 = vrot.slane %v271, %v293
        %v296 = vunpack.c.l.s4 1966171168
        %v297 = vunpack.c.0.s8 %v296
        %v298 = vlaneseq
        %v299 = vshrl.u32 %v298, 7
        %v300 = vsub.s32 %v297, %v299
        %v301 = vrot.slane %v287, %v300
        %v302 = vcombine.high %v294, %v294
        %v303 = vcombine.high %v301, %v301
        %v305 = vunpack.c.l.s4 1966171168
        %v306 = vunpack.c.0.s8 %v305
        %v307 = vlaneseq
        %v308 = vshrl.u32 %v307, 7
        %v309 = vsub.s32 %v306, %v308
        %v310 = vrot.slane %v294, %v309
        %v312 = vunpack.c.l.s4 1966171168
        %v313 = vunpack.c.0.s8 %v312
        %v314 = vlaneseq
        %v315 = vshrl.u32 %v314, 7
        %v316 = vsub.s32 %v313, %v315
        %v317 = vrot.slane %v301, %v316
        %v319 = vunpack.c.l.s4 1966171168
        %v320 = vunpack.c.0.s8 %v319
        %v321 = vlaneseq
        %v322 = vshrl.u32 %v321, 7
        %v323 = vsub.s32 %v320, %v322
        %v324 = vrot.slane %v302, %v323
        %v326 = vunpack.c.l.s4 1966171168
        %v327 = vunpack.c.0.s8 %v326
        %v328 = vlaneseq
        %v329 = vshrl.u32 %v328, 7
        %v330 = vsub.s32 %v327, %v329
        %v331 = vrot.slane %v303, %v330
        %v332 = vcombine.high %v310, %v310
        %v333 = vcombine.high %v317, %v317
        %v334 = vcombine.high %v324, %v324
        %v335 = vcombine.high %v331, %v331
        %v336 = vld [vmem:[%s230] sm:$0xff]
        %v337 = vld [vmem:[%s230 + $0x8] sm:$0xff]
        %v338 = vld [vmem:[%s230 + $0x10] sm:$0xff]
        %v339 = vld [vmem:[%s230 + $0x18] sm:$0xff]
        %v340 = vld [vmem:[%s230 + $0x20] sm:$0xff]
        %v341 = vld [vmem:[%s230 + $0x28] sm:$0xff]
        %v342 = vld [vmem:[%s230 + $0x30] sm:$0xff]
        %v343 = vld [vmem:[%s230 + $0x38] sm:$0xff]
        %v344 = vlaneseq
        %v345 = vshrl.u32 %v344, 7
        %v346 = vsub.s32 0, %v345
        %v347 = vrot.slane %v310, %v346
        %v348 = vlaneseq
        %v349 = vshrl.u32 %v348, 7
        %v350 = vsub.s32 0, %v349
        %v351 = vrot.slane %v324, %v350
        %v352 = vlaneseq
        %v353 = vshrl.u32 %v352, 7
        %v354 = vsub.s32 0, %v353
        %v355 = vrot.slane %v332, %v354
        %v356 = vlaneseq
        %v357 = vshrl.u32 %v356, 7
        %v358 = vsub.s32 0, %v357
        %v359 = vrot.slane %v334, %v358
        %v360 = vlaneseq
        %v361 = vshrl.u32 %v360, 7
        %v362 = vsub.s32 0, %v361
        %v363 = vrot.slane %v317, %v362
        %v364 = vlaneseq
        %v365 = vshrl.u32 %v364, 7
        %v366 = vsub.s32 0, %v365
        %v367 = vrot.slane %v331, %v366
        %v368 = vlaneseq
        %v369 = vshrl.u32 %v368, 7
        %v370 = vsub.s32 0, %v369
        %v371 = vrot.slane %v333, %v370
        %v372 = vlaneseq
        %v373 = vshrl.u32 %v372, 7
        %v374 = vsub.s32 0, %v373
        %v375 = vrot.slane %v335, %v374
        %v384 = vsub.f32 %v347, %v336
        %v385 = vsub.f32 %v351, %v337
        %v386 = vsub.f32 %v355, %v338
        %v387 = vsub.f32 %v359, %v339
        %v388 = vsub.f32 %v363, %v340
        %v389 = vsub.f32 %v367, %v341
        %v390 = vsub.f32 %v371, %v342
        %v391 = vsub.f32 %v375, %v343
        %v392 = vmul.f32 %v384, %v384
        %v393 = vmul.f32 %v385, %v385
        %v394 = vmul.f32 %v386, %v386
        %v395 = vmul.f32 %v387, %v387
        %v396 = vmul.f32 %v388, %v388
        %v397 = vmul.f32 %v389, %v389
        %v398 = vmul.f32 %v390, %v390
        %v399 = vmul.f32 %v391, %v391
        %v400 = vsel %vm275, %v392, 0.0
        %401 = vadd.xlane.f32.xlu0 %v400
        %v402 = vpop.xlane.xlu0 %401
        %v403 = vsel %vm275, %v393, 0.0
        %404 = vadd.xlane.f32.xlu0 %v403
        %v405 = vpop.xlane.xlu0 %404
        %v406 = vsel %vm275, %v394, 0.0
        %407 = vadd.xlane.f32.xlu0 %v406
        %v408 = vpop.xlane.xlu0 %407
        %v409 = vsel %vm275, %v395, 0.0
        %410 = vadd.xlane.f32.xlu0 %v409
        %v411 = vpop.xlane.xlu0 %410
        %v412 = vsel %vm275, %v396, 0.0
        %413 = vadd.xlane.f32.xlu0 %v412
        %v414 = vpop.xlane.xlu0 %413
        %v415 = vsel %vm275, %v397, 0.0
        %416 = vadd.xlane.f32.xlu0 %v415
        %v417 = vpop.xlane.xlu0 %416
        %v418 = vsel %vm275, %v398, 0.0
        %419 = vadd.xlane.f32.xlu0 %v418
        %v420 = vpop.xlane.xlu0 %419
        %v421 = vsel %vm275, %v399, 0.0
        %422 = vadd.xlane.f32.xlu0 %v421
        %v423 = vpop.xlane.xlu0 %422
        %v424 = vrsqrt.pop %v402
        %v425 = vmul.f32 %v402, %v424
        %vm426 = vcmp.eq.f32.partialorder %v402, inf
        %v427 = vsel %vm426, %v402, %v425
        %vm428 = vcmp.eq.f32.partialorder %v402, 0.0
        %v429 = vand.u32 %v402, 2147483648
        %v430 = vsel %vm428, %v429, %v427
        %v431 = vrsqrt.pop %v405
        %v432 = vmul.f32 %v405, %v431
        %vm433 = vcmp.eq.f32.partialorder %v405, inf
        %v434 = vsel %vm433, %v405, %v432
        %vm435 = vcmp.eq.f32.partialorder %v405, 0.0
        %v436 = vand.u32 %v405, 2147483648
        %v437 = vsel %vm435, %v436, %v434
        %v438 = vrsqrt.pop %v408
        %v439 = vmul.f32 %v408, %v438
        %vm440 = vcmp.eq.f32.partialorder %v408, inf
        %v441 = vsel %vm440, %v408, %v439
        %vm442 = vcmp.eq.f32.partialorder %v408, 0.0
        %v443 = vand.u32 %v408, 2147483648
        %v444 = vsel %vm442, %v443, %v441
        %v445 = vrsqrt.pop %v411
        %v446 = vmul.f32 %v411, %v445
        %vm447 = vcmp.eq.f32.partialorder %v411, inf
        %v448 = vsel %vm447, %v411, %v446
        %vm449 = vcmp.eq.f32.partialorder %v411, 0.0
        %v450 = vand.u32 %v411, 2147483648
        %v451 = vsel %vm449, %v450, %v448
        %v452 = vrsqrt.pop %v414
        %v453 = vmul.f32 %v414, %v452
        %vm454 = vcmp.eq.f32.partialorder %v414, inf
        %v455 = vsel %vm454, %v414, %v453
        %vm456 = vcmp.eq.f32.partialorder %v414, 0.0
        %v457 = vand.u32 %v414, 2147483648
        %v458 = vsel %vm456, %v457, %v455
        %v459 = vrsqrt.pop %v417
        %v460 = vmul.f32 %v417, %v459
        %vm461 = vcmp.eq.f32.partialorder %v417, inf
        %v462 = vsel %vm461, %v417, %v460
        %vm463 = vcmp.eq.f32.partialorder %v417, 0.0
        %v464 = vand.u32 %v417, 2147483648
        %v465 = vsel %vm463, %v464, %v462
        %v466 = vrsqrt.pop %v420
        %v467 = vmul.f32 %v420, %v466
        %vm468 = vcmp.eq.f32.partialorder %v420, inf
        %v469 = vsel %vm468, %v420, %v467
        %vm470 = vcmp.eq.f32.partialorder %v420, 0.0
        %v471 = vand.u32 %v420, 2147483648
        %v472 = vsel %vm470, %v471, %v469
        %v473 = vrsqrt.pop %v423
        %v474 = vmul.f32 %v423, %v473
        %vm475 = vcmp.eq.f32.partialorder %v423, inf
        %v476 = vsel %vm475, %v423, %v474
        %vm477 = vcmp.eq.f32.partialorder %v423, 0.0
        %v478 = vand.u32 %v423, 2147483648
        %v479 = vsel %vm477, %v478, %v476
        %v480 = vsub.f32 0.0, %v285
        %v481 = vsub.f32 0.0, %v430
        %v482 = vsub.f32 0.0, %v437
        %v483 = vsub.f32 0.0, %v444
        %v484 = vsub.f32 0.0, %v451
        %v485 = vsub.f32 0.0, %v458
        %v486 = vsub.f32 0.0, %v465
        %v487 = vsub.f32 0.0, %v472
        %v488 = vsub.f32 0.0, %v479
        %v497 = vlaneseq
        %v498 = vand.u32 %v497, 127
        %v499 = vlaneseq
        %v500 = vshrl.u32 %v499, 7
        %v501 = vsub.s32 %v498, %v500
        %v502 = vrot.slane %v481, %v501
        %v503 = vlaneseq
        %v504 = vshrl.u32 %v503, 7
        %v505 = vsub.s32 %v498, %v504
        %v506 = vrot.slane %v482, %v505
        %v507 = vlaneseq
        %v508 = vshrl.u32 %v507, 7
        %v509 = vsub.s32 %v498, %v508
        %v510 = vrot.slane %v483, %v509
        %v511 = vlaneseq
        %v512 = vshrl.u32 %v511, 7
        %v513 = vsub.s32 %v498, %v512
        %v514 = vrot.slane %v484, %v513
        %v515 = vlaneseq
        %v516 = vshrl.u32 %v515, 7
        %v517 = vsub.s32 %v498, %v516
        %v518 = vrot.slane %v485, %v517
        %v519 = vlaneseq
        %v520 = vshrl.u32 %v519, 7
        %v521 = vsub.s32 %v498, %v520
        %v522 = vrot.slane %v486, %v521
        %v523 = vlaneseq
        %v524 = vshrl.u32 %v523, 7
        %v525 = vsub.s32 %v498, %v524
        %v526 = vrot.slane %v487, %v525
        %v527 = vlaneseq
        %v528 = vshrl.u32 %v527, 7
        %v529 = vsub.s32 %v498, %v528
        %v530 = vrot.slane %v488, %v529
        %vm531 = vcmask 1041409
        %v532 = vsel %vm531, %v506, %v502
        %vm533 = vcmask 1042434
        %v534 = vsel %vm533, %v510, %v532
        %vm535 = vcmask 1043459
        %v536 = vsel %vm535, %v514, %v534
        %vm537 = vcmask 1044484
        %v538 = vsel %vm537, %v518, %v536
        %vm539 = vcmask 1045509
        %v540 = vsel %vm539, %v522, %v538
        %vm541 = vcmask 1046534
        %v542 = vsel %vm541, %v526, %v540
        %vm543 = vcmask 1047559
        %v544 = vsel %vm543, %v530, %v542
        %vm546 = vcmask 64512
        %v547 = vsel %vm546, %v544, -inf
        %548 = vmax.xlane.f32.xlu0 %v547
        %v549 = vpop.xlane.xlu0 %548
        %v550 = vmax.f32 %v480, %v549
        %v551 = vsub.f32 %v480, %v550
        %v552 = vmul.f32 %v551, 1.442695
        %v553 = vpow.pop %v552
        %v555 = vlaneseq
        %v556 = vshrl.u32 %v555, 7
        %v557 = vsub.s32 0, %v556
        %v558 = vrot.slane %v550, %v557
        %v559 = vlaneseq
        %v560 = vshrl.u32 %v559, 7
        %v561 = vsub.s32 1, %v560
        %v562 = vrot.slane %v550, %v561
        %v563 = vlaneseq
        %v564 = vshrl.u32 %v563, 7
        %v565 = vsub.s32 2, %v564
        %v566 = vrot.slane %v550, %v565
        %v567 = vlaneseq
        %v568 = vshrl.u32 %v567, 7
        %v569 = vsub.s32 3, %v568
        %v570 = vrot.slane %v550, %v569
        %v571 = vlaneseq
        %v572 = vshrl.u32 %v571, 7
        %v573 = vsub.s32 4, %v572
        %v574 = vrot.slane %v550, %v573
        %v575 = vlaneseq
        %v576 = vshrl.u32 %v575, 7
        %v577 = vsub.s32 5, %v576
        %v578 = vrot.slane %v550, %v577
        %v579 = vlaneseq
        %v580 = vshrl.u32 %v579, 7
        %v581 = vsub.s32 6, %v580
        %v582 = vrot.slane %v550, %v581
        %v583 = vlaneseq
        %v584 = vshrl.u32 %v583, 7
        %v585 = vsub.s32 7, %v584
        %v586 = vrot.slane %v550, %v585
        %v595 = vsub.f32 %v481, %v558
        %v596 = vsub.f32 %v482, %v562
        %v597 = vsub.f32 %v483, %v566
        %v598 = vsub.f32 %v484, %v570
        %v599 = vsub.f32 %v485, %v574
        %v600 = vsub.f32 %v486, %v578
        %v601 = vsub.f32 %v487, %v582
        %v602 = vsub.f32 %v488, %v586
        %v603 = vmul.f32 %v595, 1.442695
        %v604 = vpow.pop %v603
        %v605 = vmul.f32 %v596, 1.442695
        %v606 = vpow.pop %v605
        %v607 = vmul.f32 %v597, 1.442695
        %v608 = vpow.pop %v607
        %v609 = vmul.f32 %v598, 1.442695
        %v610 = vpow.pop %v609
        %v611 = vmul.f32 %v599, 1.442695
        %v612 = vpow.pop %v611
        %v613 = vmul.f32 %v600, 1.442695
        %v614 = vpow.pop %v613
        %v615 = vmul.f32 %v601, 1.442695
        %v616 = vpow.pop %v615
        %v617 = vmul.f32 %v602, 1.442695
        %v618 = vpow.pop %v617
        %627 = vset.pattern.permute.xlu0 0
        %628 = vperm.xlu0 %627, %v604
        %v629 = vpop.permute.xlu0 %628
        %630 = vset.pattern.permute.xlu0 0
        %631 = vperm.xlu0 %630, %v606
        %v632 = vpop.permute.xlu0 %631
        %633 = vset.pattern.permute.xlu0 0
        %634 = vperm.xlu0 %633, %v608
        %v635 = vpop.permute.xlu0 %634
        %636 = vset.pattern.permute.xlu0 0
        %637 = vperm.xlu0 %636, %v610
        %v638 = vpop.permute.xlu0 %637
        %639 = vset.pattern.permute.xlu0 0
        %640 = vperm.xlu0 %639, %v612
        %v641 = vpop.permute.xlu0 %640
        %642 = vset.pattern.permute.xlu0 0
        %643 = vperm.xlu0 %642, %v614
        %v644 = vpop.permute.xlu0 %643
        %645 = vset.pattern.permute.xlu0 0
        %646 = vperm.xlu0 %645, %v616
        %v647 = vpop.permute.xlu0 %646
        %648 = vset.pattern.permute.xlu0 0
        %649 = vperm.xlu0 %648, %v618
        %v650 = vpop.permute.xlu0 %649
        %v651 = vlaneseq
        %v652 = vshrl.u32 %v651, 7
        %v653 = vsub.s32 %v498, %v652
        %v654 = vrot.slane %v629, %v653
        %v655 = vlaneseq
        %v656 = vshrl.u32 %v655, 7
        %v657 = vsub.s32 %v498, %v656
        %v658 = vrot.slane %v632, %v657
        %v659 = vlaneseq
        %v660 = vshrl.u32 %v659, 7
        %v661 = vsub.s32 %v498, %v660
        %v662 = vrot.slane %v635, %v661
        %v663 = vlaneseq
        %v664 = vshrl.u32 %v663, 7
        %v665 = vsub.s32 %v498, %v664
        %v666 = vrot.slane %v638, %v665
        %v667 = vlaneseq
        %v668 = vshrl.u32 %v667, 7
        %v669 = vsub.s32 %v498, %v668
        %v670 = vrot.slane %v641, %v669
        %v671 = vlaneseq
        %v672 = vshrl.u32 %v671, 7
        %v673 = vsub.s32 %v498, %v672
        %v674 = vrot.slane %v644, %v673
        %v675 = vlaneseq
        %v676 = vshrl.u32 %v675, 7
        %v677 = vsub.s32 %v498, %v676
        %v678 = vrot.slane %v647, %v677
        %v679 = vlaneseq
        %v680 = vshrl.u32 %v679, 7
        %v681 = vsub.s32 %v498, %v680
        %v682 = vrot.slane %v650, %v681
        %v683 = vsel %vm531, %v658, %v654
        %v684 = vsel %vm533, %v662, %v683
        %v685 = vsel %vm535, %v666, %v684
        %v686 = vsel %vm537, %v670, %v685
        %v687 = vsel %vm539, %v674, %v686
        %v688 = vsel %vm541, %v678, %v687
        %v689 = vsel %vm543, %v682, %v688
        %v691 = vsel %vm546, %v689, 0.0
        %692 = vadd.xlane.f32.xlu0 %v691
        %v693 = vpop.xlane.xlu0 %692
        %v694 = vadd.f32 %v553, %v693
        %v695 = vlog2.pop %v694
        %v696 = vmul.f32 %v695, 0.6931472
        %v697 = vadd.f32 %v550, %v696
        %v698 = vadd.f32 %v285, %v697
        %vm699 = vcmask 7168
        %700 = vst.msk [vmem:[%s270] sm:$0xff] %vm699, %v698
        %p701 = scmp.lt.s32.totalorder %s20, 1
        %s702 = scalar_select %p701, %s20, 1
        %s703 = smul.addr %s702, 8
        %s704 = scalar_lea.vmem %s3, %s703
        // Predicated region
        $region45: #{tpu_custom_call.1} parent=31 // pred_check
          %p705 = pneg %p116
        $region46: #{tpu_custom_call.1} parent=31 // pred_check_branch
          %707 = sbr.rel (%p705) target = $region48
        $region47: #{tpu_custom_call.1} parent=31 // pred_region
          _
        $region48: #{tpu_custom_call.1} parent=31 // pred_fallthru
          _
      $region32: #{tpu_custom_call.1} parent=5 // pred_fallthru
        _
      %p708 = scmp.le.s32.totalorder 2, %s15
      // Predicated region
      $region49: #{tpu_custom_call.1} parent=5 // pred_check
        %p709 = pneg %p708
      $region50: #{tpu_custom_call.1} parent=5 // pred_check_branch
        %711 = sbr.rel (%p709) target = $region52
      $region51: #{tpu_custom_call.1} parent=5 // pred_region
        %s712 = ssub.s32 %s15, 2
        // Predicated region
        $region53: #{tpu_custom_call.1} parent=51 // pred_check
          %p713 = pneg %p122
        $region54: #{tpu_custom_call.1} parent=51 // pred_check_branch
          %715 = sbr.rel (%p713) target = $region56
        $region55: #{tpu_custom_call.1} parent=51 // pred_region
          %p716 = scmp.lt.s32.totalorder %s21, 1
          %s717 = scalar_select %p716, %s21, 1
          %s718 = smul.addr %s717, 8
          %s719 = scalar_lea.vmem %s3, %s718
        $region56: #{tpu_custom_call.1} parent=51 // pred_fallthru
          _
      $region52: #{tpu_custom_call.1} parent=5 // pred_fallthru
        _
    $region6: #{tpu_custom_call.1} parent=1 // loop_footer
      %s19 = sadd.s32 1, %s15
    $region7: #{tpu_custom_call.1} parent=1 // loop_footer_branch
      %14 = sbr.rel target = $region3
    $region8: #{tpu_custom_call.1} parent=1 // loop_exit
      _
    %720 = vsyncpa [#allocation3], 1
    %s721 = scalar_lea.sflag [#allocation3], 1
    %722 = vsyncpa %s721, 1
    %723 = vsyncpa [#allocation5], 1
    %s724 = scalar_lea.sflag [#allocation5], 1
    %725 = vsyncpa %s724, 1

</llo_original>
